<compile_context>
chip_gen: v7x
topology: tpu7x:2x2x1
jax: 0.10.0
libtpu: 0.0.40
codegen_flags: <defaults>
</compile_context>

<pallas_src>
import functools

import jax
import jax.numpy as jnp
from jax.experimental import pallas as pl
from jax.experimental.pallas import tpu as pltpu

HIDDEN = 32      # hidden width of the two lp layers
LANES = 128      # TPU lane width; hidden/output widths are zero-padded to this


def _round_up(x, m):
    return (x + m - 1) // m * m


def a2c_policy_kernel(x_ref, w_ref, b_ref, o_ref, *, d_in, r1, n_actions):
    """One batch tile: out = tanh(relu(relu(x@W1+b1)@W2+b2)@W3+b3)[:, :n_actions].

    w_ref is the packed, lane-dense (r1 + 256, 128) weight slab (compute dtype):
      rows [0, d_in)         : W1 (zero-padded to r1 = ceil8(d_in) rows)
      rows [r1, r1+128)      : W2 zero-padded to (128, 128)
      rows [r1+128, r1+256)  : W3 zero-padded to (128, 128)
    b_ref is a small resident (8, 128) f32 block: rows 0/1/2 = b1/b2/b3
    (zero-padded lanes).  Zero padding keeps padded lanes exactly 0 through
    ReLU, so lanes [0, n_actions) of the head match the unpadded network.
    """
    compute_dtype = w_ref.dtype
    x = x_ref[...].astype(compute_dtype)              # in-kernel cast (no wrapper pass)

    w1 = w_ref[0:d_in, :]                             # (d_in, 128), K un-padded
    w2 = w_ref[r1:r1 + LANES, :]                      # (128, 128)
    w3 = w_ref[r1 + LANES:r1 + 2 * LANES, :]          # (128, 128)
    b1 = b_ref[0:1, :]                                # (1, 128) f32
    b2 = b_ref[1:2, :]
    b3 = b_ref[2:3, :]

    # Layer 1: MXU matmul, f32 accumulate, f32 bias + ReLU.
    h1 = jnp.dot(x, w1, preferred_element_type=jnp.float32)
    h1 = jnp.maximum(h1 + b1, 0.0)

    # Layer 2 (padded lanes of h1 are exactly 0, so padded K rows contribute 0).
    h2 = jnp.dot(h1.astype(compute_dtype), w2, preferred_element_type=jnp.float32)
    h2 = jnp.maximum(h2 + b2, 0.0)

    # Head: compute full 128-lane matmul (one MXU pass either way), then store
    # only the n_actions lanes actually needed (narrow output block).
    mean = jnp.dot(h2.astype(compute_dtype), w3, preferred_element_type=jnp.float32)
    out = jnp.tanh(mean[:, :n_actions] + b3[:, :n_actions])
    o_ref[...] = out.astype(o_ref.dtype)


def pack_params(params, compute_dtype=jnp.bfloat16):
    """Pack (w1,b1,w2,b2,w3,b3) -> (weight slab [compute dtype], bias block [f32])."""
    w1, b1, w2, b2, w3, b3 = params
    d_in = w1.shape[0]
    n_actions = w3.shape[1]
    r1 = _round_up(d_in, 8)

    def pad2(a, rows, cols):
        # jnp.pad default is zero-fill; padded lanes/rows MUST stay exactly 0.
        return jnp.pad(a, ((0, rows - a.shape[0]), (0, cols - a.shape[1])))

    w_slab = jnp.concatenate(
        [pad2(w1, r1, LANES), pad2(w2, LANES, LANES), pad2(w3, LANES, LANES)],
        axis=0).astype(compute_dtype)

    b_block = jnp.zeros((8, LANES), jnp.float32)
    b_block = b_block.at[0, :HIDDEN].set(b1.reshape(-1))
    b_block = b_block.at[1, :HIDDEN].set(b2.reshape(-1))
    b_block = b_block.at[2, :n_actions].set(b3.reshape(-1))
    return w_slab, b_block


def a2c_policy_forward(x, packed, *, n_actions, block_b=4096, out_dtype=jnp.float32):
    """x: (B, D_in) any float dtype. packed: from pack_params. -> (B, n_actions)."""
    w_slab, b_block = packed
    B, d_in = x.shape
    r1 = _round_up(d_in, 8)
    w_rows = w_slab.shape[0]
    assert w_rows == r1 + 2 * LANES, "weight slab layout mismatch"

    # Batch tile: multiple of 8 sublanes; capped at ceil(B/2) so the grid has
    # >=2 steps whenever B allows it (keeps both v7x TensorCores busy, no-op on
    # v5e/v6e); capped at block_b to bound the double-buffered VMEM footprint.
    tb = max(8, _round_up(-(-B // 2), 8))
    tb = min(tb, block_b)
    grid = pl.cdiv(B, tb)   # ragged tail tile: OOB rows are masked on write

    kernel = functools.partial(a2c_policy_kernel,
                               d_in=d_in, r1=r1, n_actions=n_actions)

    return pl.pallas_call(
        kernel,
        out_shape=jax.ShapeDtypeStruct((B, n_actions), out_dtype),
        grid=(grid,),
        in_specs=[
            # Batch-tiled activation stream (double-buffered by the pipeline).
            pl.BlockSpec((tb, d_in), lambda i: (i, 0)),
            # Weight slab + bias block: constant index_map -> DMA'd once,
            # stay resident in VMEM across every batch tile.
            pl.BlockSpec((w_rows, LANES), lambda i: (0, 0)),
            pl.BlockSpec((8, LANES), lambda i: (0, 0)),
        ],
        # Narrow (tb, n_actions) output block: only the bytes that are needed.
        out_specs=pl.BlockSpec((tb, n_actions), lambda i: (i, 0)),
        compiler_params=pltpu.CompilerParams(
            dimension_semantics=("parallel",),   # shard batch tiles across TCs (v7x)
        ),
    )(x, w_slab, b_block)


def init_params(key, input_shape, n_actions):
    """PyTorch nn.Linear-style init; mean_l weight additionally scaled by 0.1."""
    def linear(key, fan_in, fan_out, w_scale=1.0):
        kw, kb = jax.random.split(key)
        bound = 1.0 / jnp.sqrt(jnp.float32(fan_in))
        w = jax.random.uniform(kw, (fan_in, fan_out), jnp.float32,
                               minval=-bound, maxval=bound) * w_scale
        b = jax.random.uniform(kb, (1, fan_out), jnp.float32,
                               minval=-bound, maxval=bound)
        return w, b

    k1, k2, k3 = jax.random.split(key, 3)
    w1, b1 = linear(k1, input_shape, HIDDEN)
    w2, b2 = linear(k2, HIDDEN, HIDDEN)
    w3, b3 = linear(k3, HIDDEN, n_actions, w_scale=0.1)
    # TODO(synk): var_l and logstd are module parameters but do not participate
    # in forward(), so they are intentionally omitted from the kernel.
    return (w1, b1, w2, b2, w3, b3)


def reference_forward(x, params):
    w1, b1, w2, b2, w3, b3 = params
    h1 = jnp.maximum(x @ w1 + b1, 0.0)
    h2 = jnp.maximum(h1 @ w2 + b2, 0.0)
    return jnp.tanh(h2 @ w3 + b3)


if __name__ == "__main__":
    key = jax.random.PRNGKey(0)
    k_x, k_p = jax.random.split(key)

    batch = 8
    input_shape = 16      # observation feature dim
    n_actions = 4         # n_actions[0] in the PyTorch module

    x = jax.random.normal(k_x, (batch, input_shape), dtype=jnp.float32)
    params = init_params(k_p, input_shape, n_actions)
    ref = reference_forward(x, params)

    # f32 weight path: matches the PyTorch/JAX reference math closely.
    packed_f32 = pack_params(params, jnp.float32)
    out_f32 = jax.block_until_ready(
        a2c_policy_forward(x, packed_f32, n_actions=n_actions))
    assert out_f32.shape == (batch, n_actions)
    assert jnp.allclose(out_f32, ref, atol=1e-4, rtol=1e-4), "f32 kernel mismatch"

    # bf16 weight path (default for v5e/v6e/v7x): bf16 MXU inputs, f32
    # accumulate, f32 biases / ReLU / tanh epilogue.
    packed_bf16 = pack_params(params, jnp.bfloat16)
    out_bf16 = jax.block_until_ready(
        a2c_policy_forward(x, packed_bf16, n_actions=n_actions))
    assert out_bf16.shape == (batch, n_actions)
    assert jnp.allclose(out_bf16, ref, atol=5e-2, rtol=5e-2), "bf16 kernel mismatch"

    print("KERNEL_OK")
</pallas_src>

<mosaic_0001>
module attributes {stable_mosaic.version = 11 : i64} {
  func.func @a2c_policy_kernel(%arg0: i32, %arg1: memref<8x16xf32, #tpu.memory_space<vmem>>, %arg2: memref<272x128xf32, #tpu.memory_space<vmem>>, %arg3: memref<8x128xf32, #tpu.memory_space<vmem>>, %arg4: memref<8x4xf32, #tpu.memory_space<vmem>>) attributes {dimension_semantics = [#tpu.dimension_semantics<parallel>], iteration_bounds = array<i64: 1>, scalar_prefetch = 0 : i64, scratch_operands = 0 : i64, tpu.core_type = #tpu.core_type<tc>, window_params = [{transform_indices = @transform_0, window_bounds = array<i64: 8, 16>}, {pipeline_mode = #tpu.pipeline_mode<synchronous>, transform_indices = @transform_1, window_bounds = array<i64: 272, 128>}, {pipeline_mode = #tpu.pipeline_mode<synchronous>, transform_indices = @transform_2, window_bounds = array<i64: 8, 128>}, {transform_indices = @transform_3, window_bounds = array<i64: 8, 4>}]} {
    %c0 = arith.constant 0 : index
    %c0_0 = arith.constant 0 : index
    %0 = vector.load %arg1[%c0, %c0_0] : memref<8x16xf32, #tpu.memory_space<vmem>>, vector<8x16xf32>
    %c0_1 = arith.constant 0 : index
    %c0_2 = arith.constant 0 : index
    %1 = vector.load %arg2[%c0_1, %c0_2] : memref<272x128xf32, #tpu.memory_space<vmem>>, vector<16x128xf32>
    %c16 = arith.constant 16 : index
    %c0_3 = arith.constant 0 : index
    %2 = vector.load %arg2[%c16, %c0_3] : memref<272x128xf32, #tpu.memory_space<vmem>>, vector<128x128xf32>
    %c144 = arith.constant 144 : index
    %c0_4 = arith.constant 0 : index
    %3 = vector.load %arg2[%c144, %c0_4] : memref<272x128xf32, #tpu.memory_space<vmem>>, vector<128x128xf32>
    %c0_5 = arith.constant 0 : index
    %c0_6 = arith.constant 0 : index
    %4 = vector.load %arg3[%c0_5, %c0_6] : memref<8x128xf32, #tpu.memory_space<vmem>>, vector<1x128xf32>
    %c1 = arith.constant 1 : index
    %c0_7 = arith.constant 0 : index
    %5 = vector.load %arg3[%c1, %c0_7] : memref<8x128xf32, #tpu.memory_space<vmem>>, vector<1x128xf32>
    %c2 = arith.constant 2 : index
    %c0_8 = arith.constant 0 : index
    %6 = vector.load %arg3[%c2, %c0_8] : memref<8x128xf32, #tpu.memory_space<vmem>>, vector<1x128xf32>
    %cst = arith.constant dense<0.000000e+00> : vector<8x128xf32>
    %7 = tpu.matmul %0, %1, %cst {dimension_numbers = #tpu.dot_dimension_numbers<[1], [0], [0], [1], [0, 0, 1, 1], [], []>} : vector<8x16xf32>, vector<16x128xf32>, vector<8x128xf32> -> vector<8x128xf32>
    %8 = vector.broadcast %4 : vector<1x128xf32> to vector<8x128xf32>
    %9 = arith.addf %7, %8 : vector<8x128xf32>
    %cst_9 = arith.constant 0.000000e+00 : f32
    %10 = vector.broadcast %cst_9 : f32 to vector<8x128xf32>
    %11 = arith.maximumf %9, %10 : vector<8x128xf32>
    %cst_10 = arith.constant dense<0.000000e+00> : vector<8x128xf32>
    %12 = tpu.matmul %11, %2, %cst_10 {dimension_numbers = #tpu.dot_dimension_numbers<[1], [0], [0], [1], [0, 0, 1, 1], [], []>} : vector<8x128xf32>, vector<128x128xf32>, vector<8x128xf32> -> vector<8x128xf32>
    %13 = vector.broadcast %5 : vector<1x128xf32> to vector<8x128xf32>
    %14 = arith.addf %12, %13 : vector<8x128xf32>
    %cst_11 = arith.constant 0.000000e+00 : f32
    %15 = vector.broadcast %cst_11 : f32 to vector<8x128xf32>
    %16 = arith.maximumf %14, %15 : vector<8x128xf32>
    %cst_12 = arith.constant dense<0.000000e+00> : vector<8x128xf32>
    %17 = tpu.matmul %16, %3, %cst_12 {dimension_numbers = #tpu.dot_dimension_numbers<[1], [0], [0], [1], [0, 0, 1, 1], [], []>} : vector<8x128xf32>, vector<128x128xf32>, vector<8x128xf32> -> vector<8x128xf32>
    %18 = vector.extract_strided_slice %17 {offsets = [0, 0], sizes = [8, 4], strides = [1, 1]} : vector<8x128xf32> to vector<8x4xf32>
    %19 = vector.extract_strided_slice %6 {offsets = [0, 0], sizes = [1, 4], strides = [1, 1]} : vector<1x128xf32> to vector<1x4xf32>
    %20 = vector.broadcast %19 : vector<1x4xf32> to vector<8x4xf32>
    %21 = arith.addf %18, %20 : vector<8x4xf32>
    %22 = math.tanh %21 : vector<8x4xf32>
    %c0_13 = arith.constant 0 : index
    %c0_14 = arith.constant 0 : index
    %23 = vector.load %arg4[%c0_13, %c0_14] : memref<8x4xf32, #tpu.memory_space<vmem>>, vector<8x4xf32>
    tpu.vector_store %arg4[%c0_13, %c0_14], %22 {strides = array<i32>} : memref<8x4xf32, #tpu.memory_space<vmem>>, vector<8x4xf32>,
    return
  }
  func.func @transform_0(%arg0: i32) -> (i32, i32) {
    %c0_i32 = arith.constant 0 : i32
    %c0_i32_0 = arith.constant 0 : i32
    return %arg0, %c0_i32 : i32, i32
  }
  func.func @transform_1(%arg0: i32) -> (i32, i32) {
    %c0_i32 = arith.constant 0 : i32
    %c0_i32_0 = arith.constant 0 : i32
    %c0_i32_1 = arith.constant 0 : i32
    return %c0_i32, %c0_i32_0 : i32, i32
  }
  func.func @transform_2(%arg0: i32) -> (i32, i32) {
    %c0_i32 = arith.constant 0 : i32
    %c0_i32_0 = arith.constant 0 : i32
    %c0_i32_1 = arith.constant 0 : i32
    return %c0_i32, %c0_i32_0 : i32, i32
  }
  func.func @transform_3(%arg0: i32) -> (i32, i32) {
    %c0_i32 = arith.constant 0 : i32
    %c0_i32_0 = arith.constant 0 : i32
    return %arg0, %c0_i32 : i32, i32
  }
}

</mosaic_0001>

<llo_original>
// kernel: tpu_custom_call.1
$region0: #{tpu_custom_call.1}
  #allocation0 [shape = 'u32[]', space=smem, size = 0x4, offset = 0x4, fixed_abs, tag = 'smem constant byte address 0x4 - core index']
  #allocation1 [shape = 'u32[144,128]{1,0:T(1,128)}', space=vmem, size = 0x12000, scoped, tag = 'internal scratch']
  %s0 = inlined_call_operand.hbm [shape: f32[8,16], index: 0, kind: input, shape index: {}]
  %s1 = inlined_call_operand.hbm [shape: f32[272,128], index: 1, kind: input, shape index: {}]
  %s2 = inlined_call_operand.hbm [shape: f32[8,128], index: 2, kind: input, shape index: {}]
  %s3 = inlined_call_operand.vmem [shape: f32[8,4], index: 3, kind: output, shape index: {}]
  %s4 = sld [smem:[#allocation0]]
  $region34: #{tpu_custom_call.1} parent=0
    _
  %s6 = ssub.s32 1, %s4
  %s7 = scalar_select 0, %s6, %s4
  $region1: #{tpu_custom_call.1} parent=0
    #allocation2 [shape = 'u8[4096]{0}', space=vmem, size = 0x1000, scoped, tag = 'input window, operand 0, single buffered']
    #allocation3 [shape = 's32[1]{0}', space=sflag, size = 0x4, scoped, tag = 'scoped memory for tpu_custom_call.1']
    #allocation4 [shape = 'u8[139264]{0}', space=vmem, size = 0x22000, scoped, tag = 'input window, operand 1, single buffered']
    #allocation5 [shape = 's32[1]{0}', space=sflag, size = 0x4, scoped, tag = 'scoped memory for tpu_custom_call.1']
    #allocation6 [shape = 'u8[4096]{0}', space=vmem, size = 0x1000, scoped, tag = 'input window, operand 2, single buffered']
    %8 = vsyncpa [#allocation3], 0
    %9 = vsyncpa [#allocation5], 0
    // Predicated region
    $region2: #{tpu_custom_call.1} parent=1 // pred_check
      _
    $region3: #{tpu_custom_call.1} parent=1 // pred_check_branch
      %11 = sbr.rel (0) target = $region5
    $region4: #{tpu_custom_call.1} parent=1 // pred_region
      %s13 = ssub.s32 128, 128
      %14 = vsyncadd [#allocation3], %s13
      %s16 = sshll.u32 [#allocation2], 4
      %s17 = int_to_ptr.vmem [resolvable:$true] %s16
      %19 = dma.hbm_to_vmem [thread:$0]  %s0, 128, %s17, [#allocation3]
    $region5: #{tpu_custom_call.1} parent=1 // pred_fallthru
      _
    // Predicated region
    $region6: #{tpu_custom_call.1} parent=1 // pred_check
      _
    $region7: #{tpu_custom_call.1} parent=1 // pred_check_branch
      %21 = sbr.rel (0) target = $region9
    $region8: #{tpu_custom_call.1} parent=1 // pred_region
      %s23 = ssub.s32 4352, 4352
      %24 = vsyncadd [#allocation5], %s23
      %s25 = sshll.u32 [#allocation4], 4
      %s26 = int_to_ptr.vmem [resolvable:$true] %s25
      %31 = dma.hbm_to_vmem [thread:$0]  %s1, 4352, %s26, [#allocation5], 128, 128, 8
    $region9: #{tpu_custom_call.1} parent=1 // pred_fallthru
      _
    // Predicated region
    $region10: #{tpu_custom_call.1} parent=1 // pred_check
      _
    $region11: #{tpu_custom_call.1} parent=1 // pred_check_branch
      %33 = sbr.rel (0) target = $region13
    $region12: #{tpu_custom_call.1} parent=1 // pred_region
      %s35 = ssub.s32 128, 128
      %36 = vsyncadd [#allocation5], %s35
      %s38 = sshll.u32 [#allocation6], 4
      %s39 = int_to_ptr.vmem [resolvable:$true] %s38
      %41 = dma.hbm_to_vmem [thread:$0]  %s2, 128, %s39, [#allocation5]
    $region13: #{tpu_custom_call.1} parent=1 // pred_fallthru
      _
    // Predicated region
    $region14: #{tpu_custom_call.1} parent=1 // pred_check
      _
    $region15: #{tpu_custom_call.1} parent=1 // pred_check_branch
      %43 = sbr.rel (0) target = $region17
    $region16: #{tpu_custom_call.1} parent=1 // pred_region
      %44 = dma.done [#allocation3], 128
    $region17: #{tpu_custom_call.1} parent=1 // pred_fallthru
      _
    // Predicated region
    $region18: #{tpu_custom_call.1} parent=1 // pred_check
      _
    $region19: #{tpu_custom_call.1} parent=1 // pred_check_branch
      %46 = sbr.rel (0) target = $region21
    $region20: #{tpu_custom_call.1} parent=1 // pred_region
      %47 = dma.done [#allocation5], 4352
    $region21: #{tpu_custom_call.1} parent=1 // pred_fallthru
      _
    // Predicated region
    $region22: #{tpu_custom_call.1} parent=1 // pred_check
      _
    $region23: #{tpu_custom_call.1} parent=1 // pred_check_branch
      %49 = sbr.rel (0) target = $region25
    $region24: #{tpu_custom_call.1} parent=1 // pred_region
      %50 = dma.done [#allocation5], 128
    $region25: #{tpu_custom_call.1} parent=1 // pred_fallthru
      _
    %v51 = vld [vmem:[#allocation2] sm:$0xff]
    %v52 = vld [vmem:[#allocation4] sm:$0xff]
    %v53 = vld [vmem:[#allocation4 + $0x8] sm:$0xff]
    %v54 = vld [vmem:[#allocation4 + $0x10] sm:$0xff]
    %v55 = vld [vmem:[#allocation4 + $0x18] sm:$0xff]
    %v56 = vld [vmem:[#allocation4 + $0x20] sm:$0xff]
    %v57 = vld [vmem:[#allocation4 + $0x28] sm:$0xff]
    %v58 = vld [vmem:[#allocation4 + $0x30] sm:$0xff]
    %v59 = vld [vmem:[#allocation4 + $0x38] sm:$0xff]
    %v60 = vld [vmem:[#allocation4 + $0x40] sm:$0xff]
    %v61 = vld [vmem:[#allocation4 + $0x48] sm:$0xff]
    %v62 = vld [vmem:[#allocation4 + $0x50] sm:$0xff]
    %v63 = vld [vmem:[#allocation4 + $0x58] sm:$0xff]
    %v64 = vld [vmem:[#allocation4 + $0x60] sm:$0xff]
    %v65 = vld [vmem:[#allocation4 + $0x68] sm:$0xff]
    %v66 = vld [vmem:[#allocation4 + $0x70] sm:$0xff]
    %v67 = vld [vmem:[#allocation4 + $0x78] sm:$0xff]
    %v68 = vld [vmem:[#allocation4 + $0x80] sm:$0xff]
    %v69 = vld [vmem:[#allocation4 + $0x88] sm:$0xff]
    %v70 = vld [vmem:[#allocation4 + $0x90] sm:$0xff]
    %v71 = vld [vmem:[#allocation4 + $0x98] sm:$0xff]
    %v72 = vld [vmem:[#allocation4 + $0xa0] sm:$0xff]
    %v73 = vld [vmem:[#allocation4 + $0xa8] sm:$0xff]
    %v74 = vld [vmem:[#allocation4 + $0xb0] sm:$0xff]
    %v75 = vld [vmem:[#allocation4 + $0xb8] sm:$0xff]
    %v76 = vld [vmem:[#allocation4 + $0xc0] sm:$0xff]
    %v77 = vld [vmem:[#allocation4 + $0xc8] sm:$0xff]
    %v78 = vld [vmem:[#allocation4 + $0xd0] sm:$0xff]
    %v79 = vld [vmem:[#allocation4 + $0xd8] sm:$0xff]
    %v80 = vld [vmem:[#allocation4 + $0xe0] sm:$0xff]
    %v81 = vld [vmem:[#allocation4 + $0xe8] sm:$0xff]
    %v82 = vld [vmem:[#allocation4 + $0xf0] sm:$0xff]
    %v83 = vld [vmem:[#allocation4 + $0xf8] sm:$0xff]
    %v84 = vld [vmem:[#allocation4 + $0x100] sm:$0xff]
    %v85 = vld [vmem:[#allocation4 + $0x108] sm:$0xff]
    %v86 = vld [vmem:[#allocation6] sm:$0x1]
    %v87 = vld [vmem:[#allocation6 + $0x1] sm:$0x1]
    %v88 = vld [vmem:[#allocation6 + $0x2] sm:$0x1]
    %v89 = vlaneseq
    %v90 = vshrl.u32 %v89, 7
    %v91 = vsub.s32 0, %v90
    %v92 = vrot.slane %v86, %v91
    %vm93 = vcmask 130048
    %v95 = vsel %vm93, %v51, 0
    %97 = vmatprep.subr.mxu0 0.0
    %98 = vmatpush1.msra.mxu0 %v52
    %99 = vmatprep.subr.mxu0 0.0
    %100 = vmatpush1.msra.mxu0 %v53
    %101 = vmatprep.subr.mxu0 0.0
    %102 = vmatpush1.msra.mxu0 0.0
    %103 = vmatprep.subr.mxu0 0.0
    %104 = vmatpush1.msra.mxu0 0.0
    %105 = vmatprep.subr.mxu0 0.0
    %106 = vmatpush1.msra.mxu0 0.0
    %107 = vmatprep.subr.mxu0 0.0
    %108 = vmatpush1.msra.mxu0 0.0
    %109 = vmatprep.subr.mxu0 0.0
    %110 = vmatpush1.msra.mxu0 0.0
    %111 = vmatprep.subr.mxu0 0.0
    %112 = vmatpush1.msra.mxu0 0.0
    %113 = vmatprep.subr.mxu0 0.0
    %114 = vmatpush1.msra.mxu0 0.0
    %115 = vmatprep.subr.mxu0 0.0
    %116 = vmatpush1.msra.mxu0 0.0
    %117 = vmatprep.subr.mxu0 0.0
    %118 = vmatpush1.msra.mxu0 0.0
    %119 = vmatprep.subr.mxu0 0.0
    %120 = vmatpush1.msra.mxu0 0.0
    %121 = vmatprep.subr.mxu0 0.0
    %122 = vmatpush1.msra.mxu0 0.0
    %123 = vmatprep.subr.mxu0 0.0
    %124 = vmatpush1.msra.mxu0 0.0
    %125 = vmatprep.subr.mxu0 0.0
    %126 = vmatpush1.msra.mxu0 0.0
    %127 = vmatprep.subr.mxu0 0.0
    %128 = vmatpush1.msra.mxu0 0.0
    %129 = vmatprep.subr.mxu0 0.0
    %130 = vmatpush1.msra.mxu0 0.0
    %131 = vmatprep.subr.mxu0 0.0
    %132 = vmatpush1.msra.mxu0 0.0
    %133 = vmatprep.subr.mxu0 0.0
    %134 = vmatpush1.msra.mxu0 0.0
    %135 = vmatprep.subr.mxu0 0.0
    %136 = vmatpush1.msra.mxu0 0.0
    %137 = vmatprep.subr.mxu0 0.0
    %138 = vmatpush1.msra.mxu0 0.0
    %139 = vmatprep.subr.mxu0 0.0
    %140 = vmatpush1.msra.mxu0 0.0
    %141 = vmatprep.subr.mxu0 0.0
    %142 = vmatpush1.msra.mxu0 0.0
    %143 = vmatprep.subr.mxu0 0.0
    %144 = vmatpush1.msra.mxu0 0.0
    %145 = vmatprep.subr.mxu0 0.0
    %146 = vmatpush1.msra.mxu0 0.0
    %147 = vmatprep.subr.mxu0 0.0
    %148 = vmatpush1.msra.mxu0 0.0
    %149 = vmatprep.subr.mxu0 0.0
    %150 = vmatpush1.msra.mxu0 0.0
    %151 = vmatprep.subr.mxu0 0.0
    %152 = vmatpush1.msra.mxu0 0.0
    %153 = vmatprep.subr.mxu0 0.0
    %154 = vmatpush1.msra.mxu0 0.0
    %155 = vmatprep.subr.mxu0 0.0
    %156 = vmatpush1.msra.mxu0 0.0
    %157 = vmatprep.subr.mxu0 0.0
    %158 = vmatpush1.msra.mxu0 0.0
    %159 = vmatprep.subr.mxu0 0.0
    %160 = vmatpush1.msra.mxu0 0.0
    %161 = vmatprep.mubr.f32.mxu0 0.0
    %162 = vmatmul.mubr.f32.gmra.mrb[0].mxu0 %v95
    %v163 = vpop.f32.mrb[0].mxu0
    %v164 = vadd.f32 %v92, %v163
    %v165 = vpop.f32.mrb[0].mxu0
    %166 = vdwg.mxu0
    %v167 = vmax.f32 %v164, 0.0
    %v168 = vlaneseq
    %v169 = vshrl.u32 %v168, 7
    %v170 = vsub.s32 0, %v169
    %v171 = vrot.slane %v87, %v170
    %172 = vmatprep.subr.mxu0 0.0
    %173 = vmatpush1.msra.mxu0 %v54
    %174 = vmatprep.subr.mxu0 0.0
    %175 = vmatpush1.msra.mxu0 %v55
    %176 = vmatprep.subr.mxu0 0.0
    %177 = vmatpush1.msra.mxu0 %v56
    %178 = vmatprep.subr.mxu0 0.0
    %179 = vmatpush1.msra.mxu0 %v57
    %180 = vmatprep.subr.mxu0 0.0
    %181 = vmatpush1.msra.mxu0 %v58
    %182 = vmatprep.subr.mxu0 0.0
    %183 = vmatpush1.msra.mxu0 %v59
    %184 = vmatprep.subr.mxu0 0.0
    %185 = vmatpush1.msra.mxu0 %v60
    %186 = vmatprep.subr.mxu0 0.0
    %187 = vmatpush1.msra.mxu0 %v61
    %188 = vmatprep.subr.mxu0 0.0
    %189 = vmatpush1.msra.mxu0 %v62
    %190 = vmatprep.subr.mxu0 0.0
    %191 = vmatpush1.msra.mxu0 %v63
    %192 = vmatprep.subr.mxu0 0.0
    %193 = vmatpush1.msra.mxu0 %v64
    %194 = vmatprep.subr.mxu0 0.0
    %195 = vmatpush1.msra.mxu0 %v65
    %196 = vmatprep.subr.mxu0 0.0
    %197 = vmatpush1.msra.mxu0 %v66
    %198 = vmatprep.subr.mxu0 0.0
    %199 = vmatpush1.msra.mxu0 %v67
    %200 = vmatprep.subr.mxu0 0.0
    %201 = vmatpush1.msra.mxu0 %v68
    %202 = vmatprep.subr.mxu0 0.0
    %203 = vmatpush1.msra.mxu0 %v69
    %204 = vmatprep.subr.mxu0 0.0
    %205 = vmatpush1.msra.mxu0 0.0
    %206 = vmatprep.subr.mxu0 0.0
    %207 = vmatpush1.msra.mxu0 0.0
    %208 = vmatprep.subr.mxu0 0.0
    %209 = vmatpush1.msra.mxu0 0.0
    %210 = vmatprep.subr.mxu0 0.0
    %211 = vmatpush1.msra.mxu0 0.0
    %212 = vmatprep.subr.mxu0 0.0
    %213 = vmatpush1.msra.mxu0 0.0
    %214 = vmatprep.subr.mxu0 0.0
    %215 = vmatpush1.msra.mxu0 0.0
    %216 = vmatprep.subr.mxu0 0.0
    %217 = vmatpush1.msra.mxu0 0.0
    %218 = vmatprep.subr.mxu0 0.0
    %219 = vmatpush1.msra.mxu0 0.0
    %220 = vmatprep.subr.mxu0 0.0
    %221 = vmatpush1.msra.mxu0 0.0
    %222 = vmatprep.subr.mxu0 0.0
    %223 = vmatpush1.msra.mxu0 0.0
    %224 = vmatprep.subr.mxu0 0.0
    %225 = vmatpush1.msra.mxu0 0.0
    %226 = vmatprep.subr.mxu0 0.0
    %227 = vmatpush1.msra.mxu0 0.0
    %228 = vmatprep.subr.mxu0 0.0
    %229 = vmatpush1.msra.mxu0 0.0
    %230 = vmatprep.subr.mxu0 0.0
    %231 = vmatpush1.msra.mxu0 0.0
    %232 = vmatprep.subr.mxu0 0.0
    %233 = vmatpush1.msra.mxu0 0.0
    %234 = vmatprep.subr.mxu0 0.0
    %235 = vmatpush1.msra.mxu0 0.0
    %236 = vmatprep.mubr.f32.mxu0 0.0
    %237 = vmatmul.mubr.f32.gmra.mrb[0].mxu0 %v167
    %v238 = vpop.f32.mrb[0].mxu0
    %v239 = vadd.f32 %v171, %v238
    %v240 = vpop.f32.mrb[0].mxu0
    %241 = vdwg.mxu0
    %v242 = vmax.f32 %v239, 0.0
    %243 = vmatprep.subr.mxu0 0.0
    %244 = vmatpush1.msra.mxu0 %v70
    %245 = vmatprep.subr.mxu0 0.0
    %246 = vmatpush1.msra.mxu0 %v71
    %247 = vmatprep.subr.mxu0 0.0
    %248 = vmatpush1.msra.mxu0 %v72
    %249 = vmatprep.subr.mxu0 0.0
    %250 = vmatpush1.msra.mxu0 %v73
    %251 = vmatprep.subr.mxu0 0.0
    %252 = vmatpush1.msra.mxu0 %v74
    %253 = vmatprep.subr.mxu0 0.0
    %254 = vmatpush1.msra.mxu0 %v75
    %255 = vmatprep.subr.mxu0 0.0
    %256 = vmatpush1.msra.mxu0 %v76
    %257 = vmatprep.subr.mxu0 0.0
    %258 = vmatpush1.msra.mxu0 %v77
    %259 = vmatprep.subr.mxu0 0.0
    %260 = vmatpush1.msra.mxu0 %v78
    %261 = vmatprep.subr.mxu0 0.0
    %262 = vmatpush1.msra.mxu0 %v79
    %263 = vmatprep.subr.mxu0 0.0
    %264 = vmatpush1.msra.mxu0 %v80
    %265 = vmatprep.subr.mxu0 0.0
    %266 = vmatpush1.msra.mxu0 %v81
    %267 = vmatprep.subr.mxu0 0.0
    %268 = vmatpush1.msra.mxu0 %v82
    %269 = vmatprep.subr.mxu0 0.0
    %270 = vmatpush1.msra.mxu0 %v83
    %271 = vmatprep.subr.mxu0 0.0
    %272 = vmatpush1.msra.mxu0 %v84
    %273 = vmatprep.subr.mxu0 0.0
    %274 = vmatpush1.msra.mxu0 %v85
    %275 = vmatprep.subr.mxu0 0.0
    %276 = vmatpush1.msra.mxu0 0.0
    %277 = vmatprep.subr.mxu0 0.0
    %278 = vmatpush1.msra.mxu0 0.0
    %279 = vmatprep.subr.mxu0 0.0
    %280 = vmatpush1.msra.mxu0 0.0
    %281 = vmatprep.subr.mxu0 0.0
    %282 = vmatpush1.msra.mxu0 0.0
    %283 = vmatprep.subr.mxu0 0.0
    %284 = vmatpush1.msra.mxu0 0.0
    %285 = vmatprep.subr.mxu0 0.0
    %286 = vmatpush1.msra.mxu0 0.0
    %287 = vmatprep.subr.mxu0 0.0
    %288 = vmatpush1.msra.mxu0 0.0
    %289 = vmatprep.subr.mxu0 0.0
    %290 = vmatpush1.msra.mxu0 0.0
    %291 = vmatprep.subr.mxu0 0.0
    %292 = vmatpush1.msra.mxu0 0.0
    %293 = vmatprep.subr.mxu0 0.0
    %294 = vmatpush1.msra.mxu0 0.0
    %295 = vmatprep.subr.mxu0 0.0
    %296 = vmatpush1.msra.mxu0 0.0
    %297 = vmatprep.subr.mxu0 0.0
    %298 = vmatpush1.msra.mxu0 0.0
    %299 = vmatprep.subr.mxu0 0.0
    %300 = vmatpush1.msra.mxu0 0.0
    %301 = vmatprep.subr.mxu0 0.0
    %302 = vmatpush1.msra.mxu0 0.0
    %303 = vmatprep.subr.mxu0 0.0
    %304 = vmatpush1.msra.mxu0 0.0
    %305 = vmatprep.subr.mxu0 0.0
    %306 = vmatpush1.msra.mxu0 0.0
    %307 = vmatprep.mubr.f32.mxu0 0.0
    %308 = vmatmul.mubr.f32.gmra.mrb[0].mxu0 %v242
    %v309 = vpop.f32.mrb[0].mxu0
    %v310 = vadd.f32 0.0, %v309
    %v311 = vpop.f32.mrb[0].mxu0
    %312 = vdwg.mxu0
    %v313 = vlaneseq
    %v314 = vshrl.u32 %v313, 7
    %v315 = vsub.s32 0, %v314
    %v316 = vrot.slane %v88, %v315
    %v317 = vadd.f32 %v310, %v316
    %v318 = vtanh.pop %v317
    %vm319 = vcmask 31744
    %320 = vst.msk [vmem:[%s3] sm:$0xff] %vm319, %v318
    // Predicated region
    $region26: #{tpu_custom_call.1} parent=1 // pred_check
      _
    $region27: #{tpu_custom_call.1} parent=1 // pred_check_branch
      %322 = sbr.rel (0) target = $region29
    $region28: #{tpu_custom_call.1} parent=1 // pred_region
      _
    $region29: #{tpu_custom_call.1} parent=1 // pred_fallthru
      _
    // Predicated region
    $region30: #{tpu_custom_call.1} parent=1 // pred_check
      _
    $region31: #{tpu_custom_call.1} parent=1 // pred_check_branch
      %324 = sbr.rel (0) target = $region33
    $region32: #{tpu_custom_call.1} parent=1 // pred_region
      _
    $region33: #{tpu_custom_call.1} parent=1 // pred_fallthru
      _
    %325 = vsyncpa [#allocation3], 1
    %326 = vsyncpa [#allocation5], 1

</llo_original>
